<compile_context>
chip_gen: v7x
topology: tpu7x:2x2x1
jax: 0.10.0
libtpu: 0.0.40
codegen_flags: <defaults>
</compile_context>

<pallas_src>
import math

import jax
import jax.numpy as jnp
from jax.experimental import pallas as pl
from jax.experimental.pallas import tpu as pltpu


def _round_up(a: int, b: int) -> int:
    return (a + b - 1) // b * b


def _make_gcn_kernel(has_bias: bool):
    """Build the GCN kernel body; `has_bias` decides the ref signature."""

    def kernel(*refs):
        if has_bias:
            x_ref, adj_ref, w_ref, b_ref, o_ref, acc_ref = refs
        else:
            x_ref, adj_ref, w_ref, o_ref, acc_ref = refs
            b_ref = None

        k = pl.program_id(1)  # reduction (adj-column) tile index, innermost axis

        @pl.when(k == 0)
        def _():
            acc_ref[...] = jnp.zeros_like(acc_ref)

        # support_k = X[k-tile] @ W   (W resident; recompute cost ~ f_in/TM extra MXU)
        support = jnp.dot(
            x_ref[...], w_ref[...], preferred_element_type=jnp.float32
        )
        # acc += A[i-tile, k-tile] @ support_k   (dominant, HBM-streamed matmul)
        acc_ref[...] += jnp.dot(
            adj_ref[...],
            support.astype(adj_ref.dtype),  # no-op in f32 mode, bf16 in bf16 mode
            preferred_element_type=jnp.float32,
        )

        @pl.when(k == pl.num_programs(1) - 1)
        def _():
            out = acc_ref[...]
            if b_ref is not None:
                out = out + b_ref[...]  # bias added exactly once
            o_ref[...] = out.astype(o_ref.dtype)

    return kernel


def graph_convolution(x, adj, weight, bias=None, *,
                      compute_dtype=jnp.float32, tile=512):
    """GCN layer forward.

    x: [N, f_in], adj: [N, N] (dense), weight: [f_in, f_out],
    bias: [f_out] or None. Returns [N, f_out] float32.
    compute_dtype=jnp.bfloat16 halves adj/x HBM traffic (f32 accumulation).
    """
    N, f_in = x.shape
    f_out = weight.shape[1]
    assert adj.shape == (N, N)

    # ---- tile selection: 128-aligned, sized for streaming adj through VMEM ----
    n_pad0 = _round_up(N, 128)
    tm = tk = min(n_pad0, _round_up(tile, 128))
    n_pad = _round_up(N, tm)

    # ---- cast / zero-pad inputs (zero pads contribute nothing) ----
    cdt = jnp.dtype(compute_dtype)
    x_c = x.astype(cdt)
    adj_c = adj.astype(cdt)
    w_c = weight.astype(cdt)
    if n_pad != N:
        x_c = jnp.pad(x_c, ((0, n_pad - N), (0, 0)))
        adj_c = jnp.pad(adj_c, ((0, n_pad - N), (0, n_pad - N)))

    grid = (n_pad // tm, n_pad // tk)  # (row tiles, reduction tiles) — reduction last

    in_specs = [
        pl.BlockSpec((tk, f_in), lambda i, k: (k, 0)),     # x: reduction-tile rows
        pl.BlockSpec((tm, tk), lambda i, k: (i, k)),       # adj: streamed (TM,TK) tile
        pl.BlockSpec((f_in, f_out), lambda i, k: (0, 0)),  # weight: resident, tiny
    ]
    args = [x_c, adj_c, w_c]
    has_bias = bias is not None
    if has_bias:
        in_specs.append(pl.BlockSpec((1, f_out), lambda i, k: (0, 0)))
        args.append(bias.astype(jnp.float32).reshape(1, f_out))

    out = pl.pallas_call(
        _make_gcn_kernel(has_bias),
        out_shape=jax.ShapeDtypeStruct((n_pad, f_out), jnp.float32),
        grid_spec=pltpu.PrefetchScalarGridSpec(
            num_scalar_prefetch=0,
            grid=grid,
            in_specs=in_specs,
            out_specs=pl.BlockSpec((tm, f_out), lambda i, k: (i, 0)),
            scratch_shapes=[pltpu.VMEM((tm, f_out), jnp.float32)],
        ),
        compiler_params=pltpu.CompilerParams(
            # row axis parallel (uses both TCs on v7x), reduction axis arbitrary
            dimension_semantics=("parallel", "arbitrary"),
        ),
    )(*args)

    return out[:N] if n_pad != N else out


if __name__ == "__main__":
    # Small, deterministic setup consistent with the module's forward.
    N, in_features, out_features = 64, 32, 16

    key = jax.random.PRNGKey(0)
    kx, kadj, kw, kb = jax.random.split(key, 4)

    x = jax.random.normal(kx, (N, in_features), dtype=jnp.float32)
    adj_raw = (jax.random.uniform(kadj, (N, N)) < 0.2).astype(jnp.float32)
    adj = adj_raw + jnp.eye(N, dtype=jnp.float32)        # self loops
    adj = adj / jnp.sum(adj, axis=1, keepdims=True)      # row-normalize

    # Parameter init mirrors reset_parameters(): uniform(-stdv, stdv).
    stdv = 1.0 / math.sqrt(out_features)
    weight = jax.random.uniform(kw, (in_features, out_features),
                                minval=-stdv, maxval=stdv, dtype=jnp.float32)
    bias = jax.random.uniform(kb, (out_features,),
                              minval=-stdv, maxval=stdv, dtype=jnp.float32)

    ref = adj @ (x @ weight) + bias

    # 1) f32 path (exact module semantics).
    out = jax.block_until_ready(graph_convolution(x, adj, weight, bias))
    assert out.shape == (N, out_features)
    assert jnp.allclose(out, ref, atol=1e-4, rtol=1e-4), "f32 mismatch"

    # 2) bias=None path.
    out_nb = jax.block_until_ready(graph_convolution(x, adj, weight, None))
    assert jnp.allclose(out_nb, adj @ (x @ weight), atol=1e-4, rtol=1e-4), \
        "no-bias mismatch"

    # 3) multi-tile grid: small tile forces a (2, 2) grid at demo size and
    #    exercises the accumulator init/finalize path plus padding (200 % 128 != 0).
    N2 = 200
    k2x, k2a = jax.random.split(jax.random.PRNGKey(1))
    x2 = jax.random.normal(k2x, (N2, in_features), dtype=jnp.float32)
    a2 = (jax.random.uniform(k2a, (N2, N2)) < 0.2).astype(jnp.float32)
    a2 = a2 + jnp.eye(N2, dtype=jnp.float32)
    a2 = a2 / jnp.sum(a2, axis=1, keepdims=True)
    ref2 = a2 @ (x2 @ weight) + bias
    out2 = jax.block_until_ready(
        graph_convolution(x2, a2, weight, bias, tile=128))
    assert jnp.allclose(out2, ref2, atol=1e-4, rtol=1e-4), "tiled mismatch"

    # 4) bf16 streaming path (halves adj HBM traffic, f32 accumulation) — looser
    #    tolerance vs the f32 reference.
    out_bf16 = jax.block_until_ready(
        graph_convolution(x, adj, weight, bias, compute_dtype=jnp.bfloat16))
    assert jnp.allclose(out_bf16, ref, atol=5e-2, rtol=5e-2), "bf16 mismatch"

    print("KERNEL_OK")
</pallas_src>

<mosaic_0001>
module attributes {stable_mosaic.version = 11 : i64} {
  func.func @kernel(%arg0: i32, %arg1: i32, %arg2: memref<128x32xf32, #tpu.memory_space<vmem>>, %arg3: memref<128x128xf32, #tpu.memory_space<vmem>>, %arg4: memref<32x16xf32, #tpu.memory_space<vmem>>, %arg5: memref<1x16xf32, #tpu.memory_space<vmem>>, %arg6: memref<128x16xf32, #tpu.memory_space<vmem>>, %arg7: memref<128x16xf32, #tpu.memory_space<vmem>>) attributes {dimension_semantics = [#tpu.dimension_semantics<parallel>, #tpu.dimension_semantics<arbitrary>], iteration_bounds = array<i64: 1, 1>, scalar_prefetch = 0 : i64, scratch_operands = 1 : i64, tpu.core_type = #tpu.core_type<tc>, window_params = [{transform_indices = @transform_0, window_bounds = array<i64: 128, 32>}, {transform_indices = @transform_1, window_bounds = array<i64: 128, 128>}, {pipeline_mode = #tpu.pipeline_mode<synchronous>, transform_indices = @transform_2, window_bounds = array<i64: 32, 16>}, {pipeline_mode = #tpu.pipeline_mode<synchronous>, transform_indices = @transform_3, window_bounds = array<i64: 1, 16>}, {transform_indices = @transform_4, window_bounds = array<i64: 128, 16>}]} {
    %c0_i32 = arith.constant 0 : i32
    %0 = arith.cmpi eq, %arg1, %c0_i32 : i32
    %1 = arith.extui %0 : i1 to i32
    %c0_i32_0 = arith.constant 0 : i32
    %2 = arith.cmpi ne, %1, %c0_i32_0 : i32
    scf.if %2 {
      %cst_13 = arith.constant 0.000000e+00 : f32
      %14 = vector.broadcast %cst_13 : f32 to vector<128x16xf32>
      %c0_14 = arith.constant 0 : index
      %c0_15 = arith.constant 0 : index
      %15 = vector.load %arg7[%c0_14, %c0_15] : memref<128x16xf32, #tpu.memory_space<vmem>>, vector<128x16xf32>
      tpu.vector_store %arg7[%c0_14, %c0_15], %14 {strides = array<i32>} : memref<128x16xf32, #tpu.memory_space<vmem>>, vector<128x16xf32>,
    } else {
    }
    %c0 = arith.constant 0 : index
    %c0_1 = arith.constant 0 : index
    %3 = vector.load %arg2[%c0, %c0_1] : memref<128x32xf32, #tpu.memory_space<vmem>>, vector<128x32xf32>
    %c0_2 = arith.constant 0 : index
    %c0_3 = arith.constant 0 : index
    %4 = vector.load %arg4[%c0_2, %c0_3] : memref<32x16xf32, #tpu.memory_space<vmem>>, vector<32x16xf32>
    %cst = arith.constant dense<0.000000e+00> : vector<128x16xf32>
    %5 = tpu.matmul %3, %4, %cst {dimension_numbers = #tpu.dot_dimension_numbers<[1], [0], [0], [1], [0, 0, 1, 1], [], []>} : vector<128x32xf32>, vector<32x16xf32>, vector<128x16xf32> -> vector<128x16xf32>
    %c0_4 = arith.constant 0 : index
    %c0_5 = arith.constant 0 : index
    %6 = vector.load %arg7[%c0_4, %c0_5] : memref<128x16xf32, #tpu.memory_space<vmem>>, vector<128x16xf32>
    %c0_6 = arith.constant 0 : index
    %c0_7 = arith.constant 0 : index
    %7 = vector.load %arg3[%c0_6, %c0_7] : memref<128x128xf32, #tpu.memory_space<vmem>>, vector<128x128xf32>
    %cst_8 = arith.constant dense<0.000000e+00> : vector<128x16xf32>
    %8 = tpu.matmul %7, %5, %cst_8 {dimension_numbers = #tpu.dot_dimension_numbers<[1], [0], [0], [1], [0, 0, 1, 1], [], []>} : vector<128x128xf32>, vector<128x16xf32>, vector<128x16xf32> -> vector<128x16xf32>
    %9 = arith.addf %6, %8 : vector<128x16xf32>
    %c0_9 = arith.constant 0 : index
    %c0_10 = arith.constant 0 : index
    %10 = vector.load %arg7[%c0_9, %c0_10] : memref<128x16xf32, #tpu.memory_space<vmem>>, vector<128x16xf32>
    tpu.vector_store %arg7[%c0_9, %c0_10], %9 {strides = array<i32>} : memref<128x16xf32, #tpu.memory_space<vmem>>, vector<128x16xf32>,
    %c0_i32_11 = arith.constant 0 : i32
    %11 = arith.cmpi eq, %arg1, %c0_i32_11 : i32
    %12 = arith.extui %11 : i1 to i32
    %c0_i32_12 = arith.constant 0 : i32
    %13 = arith.cmpi ne, %12, %c0_i32_12 : i32
    scf.if %13 {
      %c0_13 = arith.constant 0 : index
      %c0_14 = arith.constant 0 : index
      %14 = vector.load %arg7[%c0_13, %c0_14] : memref<128x16xf32, #tpu.memory_space<vmem>>, vector<128x16xf32>
      %c0_15 = arith.constant 0 : index
      %c0_16 = arith.constant 0 : index
      %15 = vector.load %arg5[%c0_15, %c0_16] : memref<1x16xf32, #tpu.memory_space<vmem>>, vector<1x16xf32>
      %16 = vector.broadcast %15 : vector<1x16xf32> to vector<128x16xf32>
      %17 = arith.addf %14, %16 : vector<128x16xf32>
      %c0_17 = arith.constant 0 : index
      %c0_18 = arith.constant 0 : index
      %18 = vector.load %arg6[%c0_17, %c0_18] : memref<128x16xf32, #tpu.memory_space<vmem>>, vector<128x16xf32>
      tpu.vector_store %arg6[%c0_17, %c0_18], %17 {strides = array<i32>} : memref<128x16xf32, #tpu.memory_space<vmem>>, vector<128x16xf32>,
    } else {
    }
    return
  }
  func.func @transform_0(%arg0: i32, %arg1: i32) -> (i32, i32) {
    %c0_i32 = arith.constant 0 : i32
    %c0_i32_0 = arith.constant 0 : i32
    return %arg1, %c0_i32 : i32, i32
  }
  func.func @transform_1(%arg0: i32, %arg1: i32) -> (i32, i32) {
    %c0_i32 = arith.constant 0 : i32
    return %arg0, %arg1 : i32, i32
  }
  func.func @transform_2(%arg0: i32, %arg1: i32) -> (i32, i32) {
    %c0_i32 = arith.constant 0 : i32
    %c0_i32_0 = arith.constant 0 : i32
    %c0_i32_1 = arith.constant 0 : i32
    return %c0_i32, %c0_i32_0 : i32, i32
  }
  func.func @transform_3(%arg0: i32, %arg1: i32) -> (i32, i32) {
    %c0_i32 = arith.constant 0 : i32
    %c0_i32_0 = arith.constant 0 : i32
    %c0_i32_1 = arith.constant 0 : i32
    return %c0_i32, %c0_i32_0 : i32, i32
  }
  func.func @transform_4(%arg0: i32, %arg1: i32) -> (i32, i32) {
    %c0_i32 = arith.constant 0 : i32
    %c0_i32_0 = arith.constant 0 : i32
    return %arg0, %c0_i32 : i32, i32
  }
}

</mosaic_0001>

<llo_original>
// kernel: tpu_custom_call.1
$region0: #{tpu_custom_call.1}
  #allocation0 [shape = 'u32[]', space=smem, size = 0x4, offset = 0x4, fixed_abs, tag = 'smem constant byte address 0x4 - core index']
  #allocation1 [shape = 'u32[144,128]{1,0:T(1,128)}', space=vmem, size = 0x12000, scoped, tag = 'internal scratch']
  #allocation2 [shape = 'f32[128,16]{1,0:T(8,128)}', space=vmem, size = 0x10000, scoped, tag = 'scratch operand']
  %s0 = inlined_call_operand.vmem [shape: f32[128,32], index: 0, kind: input, shape index: {}]
  %s1 = inlined_call_operand.vmem [shape: f32[128,128], index: 1, kind: input, shape index: {}]
  %s2 = inlined_call_operand.vmem [shape: f32[32,16], index: 2, kind: input, shape index: {}]
  %s3 = inlined_call_operand.vmem [shape: f32[1,16], index: 3, kind: input, shape index: {}]
  %s4 = inlined_call_operand.vmem [shape: f32[128,16], index: 4, kind: output, shape index: {}]
  %s5 = sld [smem:[#allocation0]]
  $region34: #{tpu_custom_call.1} parent=0
    _
  %s7 = ssub.s32 1, %s5
  %s8 = scalar_select 0, %s7, %s5
  // Predicated region
  $region2: #{tpu_custom_call.1} parent=0 // pred_check
    _
  $region3: #{tpu_custom_call.1} parent=0 // pred_check_branch
    %10 = sbr.rel (0) target = $region5
  $region4: #{tpu_custom_call.1} parent=0 // pred_region
    _
  $region5: #{tpu_custom_call.1} parent=0 // pred_fallthru
    _
  // Predicated region
  $region6: #{tpu_custom_call.1} parent=0 // pred_check
    _
  $region7: #{tpu_custom_call.1} parent=0 // pred_check_branch
    %12 = sbr.rel (0) target = $region9
  $region8: #{tpu_custom_call.1} parent=0 // pred_region
    _
  $region9: #{tpu_custom_call.1} parent=0 // pred_fallthru
    _
  // Predicated region
  $region10: #{tpu_custom_call.1} parent=0 // pred_check
    _
  $region11: #{tpu_custom_call.1} parent=0 // pred_check_branch
    %14 = sbr.rel (0) target = $region13
  $region12: #{tpu_custom_call.1} parent=0 // pred_region
    _
  $region13: #{tpu_custom_call.1} parent=0 // pred_fallthru
    _
  // Predicated region
  $region14: #{tpu_custom_call.1} parent=0 // pred_check
    _
  $region15: #{tpu_custom_call.1} parent=0 // pred_check_branch
    %16 = sbr.rel (0) target = $region17
  $region16: #{tpu_custom_call.1} parent=0 // pred_region
    _
  $region17: #{tpu_custom_call.1} parent=0 // pred_fallthru
    _
  %p17 = scmp.eq.s32.totalorder 0, 0
  // Predicated region
  $region18: #{tpu_custom_call.1} parent=0 // pred_check
    %p18 = pneg %p17
  $region19: #{tpu_custom_call.1} parent=0 // pred_check_branch
    %20 = sbr.rel (%p18) target = $region21
  $region20: #{tpu_custom_call.1} parent=0 // pred_region
    %vm21 = vcmask 130048
    %22 = vst.msk [vmem:[#allocation2] sm:$0xff] %vm21, 0.0
    %23 = vst.msk [vmem:[#allocation2 + $0x8] sm:$0xff] %vm21, 0.0
    %24 = vst.msk [vmem:[#allocation2 + $0x10] sm:$0xff] %vm21, 0.0
    %25 = vst.msk [vmem:[#allocation2 + $0x18] sm:$0xff] %vm21, 0.0
    %26 = vst.msk [vmem:[#allocation2 + $0x20] sm:$0xff] %vm21, 0.0
    %27 = vst.msk [vmem:[#allocation2 + $0x28] sm:$0xff] %vm21, 0.0
    %28 = vst.msk [vmem:[#allocation2 + $0x30] sm:$0xff] %vm21, 0.0
    %29 = vst.msk [vmem:[#allocation2 + $0x38] sm:$0xff] %vm21, 0.0
    %30 = vst.msk [vmem:[#allocation2 + $0x40] sm:$0xff] %vm21, 0.0
    %31 = vst.msk [vmem:[#allocation2 + $0x48] sm:$0xff] %vm21, 0.0
    %32 = vst.msk [vmem:[#allocation2 + $0x50] sm:$0xff] %vm21, 0.0
    %33 = vst.msk [vmem:[#allocation2 + $0x58] sm:$0xff] %vm21, 0.0
    %34 = vst.msk [vmem:[#allocation2 + $0x60] sm:$0xff] %vm21, 0.0
    %35 = vst.msk [vmem:[#allocation2 + $0x68] sm:$0xff] %vm21, 0.0
    %36 = vst.msk [vmem:[#allocation2 + $0x70] sm:$0xff] %vm21, 0.0
    %37 = vst.msk [vmem:[#allocation2 + $0x78] sm:$0xff] %vm21, 0.0
  $region21: #{tpu_custom_call.1} parent=0 // pred_fallthru
    _
  %v38 = vld [vmem:[%s0] sm:$0xff]
  %v39 = vld [vmem:[%s0 + $0x8] sm:$0xff]
  %v40 = vld [vmem:[%s0 + $0x10] sm:$0xff]
  %v41 = vld [vmem:[%s0 + $0x18] sm:$0xff]
  %v42 = vld [vmem:[%s0 + $0x20] sm:$0xff]
  %v43 = vld [vmem:[%s0 + $0x28] sm:$0xff]
  %v44 = vld [vmem:[%s0 + $0x30] sm:$0xff]
  %v45 = vld [vmem:[%s0 + $0x38] sm:$0xff]
  %v46 = vld [vmem:[%s0 + $0x40] sm:$0xff]
  %v47 = vld [vmem:[%s0 + $0x48] sm:$0xff]
  %v48 = vld [vmem:[%s0 + $0x50] sm:$0xff]
  %v49 = vld [vmem:[%s0 + $0x58] sm:$0xff]
  %v50 = vld [vmem:[%s0 + $0x60] sm:$0xff]
  %v51 = vld [vmem:[%s0 + $0x68] sm:$0xff]
  %v52 = vld [vmem:[%s0 + $0x70] sm:$0xff]
  %v53 = vld [vmem:[%s0 + $0x78] sm:$0xff]
  %v54 = vld [vmem:[%s2] sm:$0xff]
  %v55 = vld [vmem:[%s2 + $0x8] sm:$0xff]
  %v56 = vld [vmem:[%s2 + $0x10] sm:$0xff]
  %v57 = vld [vmem:[%s2 + $0x18] sm:$0xff]
  %vm58 = vcmask 261120
  %v60 = vsel %vm58, %v38, 0
  %v63 = vsel %vm58, %v39, 0
  %v66 = vsel %vm58, %v40, 0
  %v69 = vsel %vm58, %v41, 0
  %v72 = vsel %vm58, %v42, 0
  %v75 = vsel %vm58, %v43, 0
  %v78 = vsel %vm58, %v44, 0
  %v81 = vsel %vm58, %v45, 0
  %v84 = vsel %vm58, %v46, 0
  %v87 = vsel %vm58, %v47, 0
  %v90 = vsel %vm58, %v48, 0
  %v93 = vsel %vm58, %v49, 0
  %v96 = vsel %vm58, %v50, 0
  %v99 = vsel %vm58, %v51, 0
  %v102 = vsel %vm58, %v52, 0
  %v105 = vsel %vm58, %v53, 0
  %107 = vmatprep.subr.mxu0 0.0
  %108 = vmatpush1.msra.mxu0 %v54
  %109 = vmatprep.subr.mxu0 0.0
  %110 = vmatpush1.msra.mxu0 %v55
  %111 = vmatprep.subr.mxu0 0.0
  %112 = vmatpush1.msra.mxu0 %v56
  %113 = vmatprep.subr.mxu0 0.0
  %114 = vmatpush1.msra.mxu0 %v57
  %115 = vmatprep.subr.mxu0 0.0
  %116 = vmatpush1.msra.mxu0 0.0
  %117 = vmatprep.subr.mxu0 0.0
  %118 = vmatpush1.msra.mxu0 0.0
  %119 = vmatprep.subr.mxu0 0.0
  %120 = vmatpush1.msra.mxu0 0.0
  %121 = vmatprep.subr.mxu0 0.0
  %122 = vmatpush1.msra.mxu0 0.0
  %123 = vmatprep.subr.mxu0 0.0
  %124 = vmatpush1.msra.mxu0 0.0
  %125 = vmatprep.subr.mxu0 0.0
  %126 = vmatpush1.msra.mxu0 0.0
  %127 = vmatprep.subr.mxu0 0.0
  %128 = vmatpush1.msra.mxu0 0.0
  %129 = vmatprep.subr.mxu0 0.0
  %130 = vmatpush1.msra.mxu0 0.0
  %131 = vmatprep.subr.mxu0 0.0
  %132 = vmatpush1.msra.mxu0 0.0
  %133 = vmatprep.subr.mxu0 0.0
  %134 = vmatpush1.msra.mxu0 0.0
  %135 = vmatprep.subr.mxu0 0.0
  %136 = vmatpush1.msra.mxu0 0.0
  %137 = vmatprep.subr.mxu0 0.0
  %138 = vmatpush1.msra.mxu0 0.0
  %139 = vmatprep.subr.mxu0 0.0
  %140 = vmatpush1.msra.mxu0 0.0
  %141 = vmatprep.subr.mxu0 0.0
  %142 = vmatpush1.msra.mxu0 0.0
  %143 = vmatprep.subr.mxu0 0.0
  %144 = vmatpush1.msra.mxu0 0.0
  %145 = vmatprep.subr.mxu0 0.0
  %146 = vmatpush1.msra.mxu0 0.0
  %147 = vmatprep.subr.mxu0 0.0
  %148 = vmatpush1.msra.mxu0 0.0
  %149 = vmatprep.subr.mxu0 0.0
  %150 = vmatpush1.msra.mxu0 0.0
  %151 = vmatprep.subr.mxu0 0.0
  %152 = vmatpush1.msra.mxu0 0.0
  %153 = vmatprep.subr.mxu0 0.0
  %154 = vmatpush1.msra.mxu0 0.0
  %155 = vmatprep.subr.mxu0 0.0
  %156 = vmatpush1.msra.mxu0 0.0
  %157 = vmatprep.subr.mxu0 0.0
  %158 = vmatpush1.msra.mxu0 0.0
  %159 = vmatprep.subr.mxu0 0.0
  %160 = vmatpush1.msra.mxu0 0.0
  %161 = vmatprep.subr.mxu0 0.0
  %162 = vmatpush1.msra.mxu0 0.0
  %163 = vmatprep.subr.mxu0 0.0
  %164 = vmatpush1.msra.mxu0 0.0
  %165 = vmatprep.subr.mxu0 0.0
  %166 = vmatpush1.msra.mxu0 0.0
  %167 = vmatprep.subr.mxu0 0.0
  %168 = vmatpush1.msra.mxu0 0.0
  %169 = vmatprep.subr.mxu0 0.0
  %170 = vmatpush1.msra.mxu0 0.0
  %171 = vmatprep.mubr.f32.mxu0 0.0
  %172 = vmatmul.mubr.f32.gmra.mrb[0].mxu0 %v60
  %v173 = vpop.f32.mrb[0].mxu0
  %v174 = vadd.f32 0.0, %v173
  %v175 = vpop.f32.mrb[0].mxu0
  %176 = vmatprep.mubr.f32.mxu0 0.0
  %177 = vmatmul.mubr.f32.gmra.mrb[0].mxu0 %v63
  %v178 = vpop.f32.mrb[0].mxu0
  %v179 = vadd.f32 0.0, %v178
  %v180 = vpop.f32.mrb[0].mxu0
  %181 = vmatprep.mubr.f32.mxu0 0.0
  %182 = vmatmul.mubr.f32.gmra.mrb[0].mxu0 %v66
  %v183 = vpop.f32.mrb[0].mxu0
  %v184 = vadd.f32 0.0, %v183
  %v185 = vpop.f32.mrb[0].mxu0
  %186 = vmatprep.mubr.f32.mxu0 0.0
  %187 = vmatmul.mubr.f32.gmra.mrb[0].mxu0 %v69
  %v188 = vpop.f32.mrb[0].mxu0
  %v189 = vadd.f32 0.0, %v188
  %v190 = vpop.f32.mrb[0].mxu0
  %191 = vmatprep.mubr.f32.mxu0 0.0
  %192 = vmatmul.mubr.f32.gmra.mrb[0].mxu0 %v72
  %v193 = vpop.f32.mrb[0].mxu0
  %v194 = vadd.f32 0.0, %v193
  %v195 = vpop.f32.mrb[0].mxu0
  %196 = vmatprep.mubr.f32.mxu0 0.0
  %197 = vmatmul.mubr.f32.gmra.mrb[0].mxu0 %v75
  %v198 = vpop.f32.mrb[0].mxu0
  %v199 = vadd.f32 0.0, %v198
  %v200 = vpop.f32.mrb[0].mxu0
  %201 = vmatprep.mubr.f32.mxu0 0.0
  %202 = vmatmul.mubr.f32.gmra.mrb[0].mxu0 %v78
  %v203 = vpop.f32.mrb[0].mxu0
  %v204 = vadd.f32 0.0, %v203
  %v205 = vpop.f32.mrb[0].mxu0
  %206 = vmatprep.mubr.f32.mxu0 0.0
  %207 = vmatmul.mubr.f32.gmra.mrb[0].mxu0 %v81
  %v208 = vpop.f32.mrb[0].mxu0
  %v209 = vadd.f32 0.0, %v208
  %v210 = vpop.f32.mrb[0].mxu0
  %211 = vmatprep.mubr.f32.mxu0 0.0
  %212 = vmatmul.mubr.f32.gmra.mrb[0].mxu0 %v84
  %v213 = vpop.f32.mrb[0].mxu0
  %v214 = vadd.f32 0.0, %v213
  %v215 = vpop.f32.mrb[0].mxu0
  %216 = vmatprep.mubr.f32.mxu0 0.0
  %217 = vmatmul.mubr.f32.gmra.mrb[0].mxu0 %v87
  %v218 = vpop.f32.mrb[0].mxu0
  %v219 = vadd.f32 0.0, %v218
  %v220 = vpop.f32.mrb[0].mxu0
  %221 = vmatprep.mubr.f32.mxu0 0.0
  %222 = vmatmul.mubr.f32.gmra.mrb[0].mxu0 %v90
  %v223 = vpop.f32.mrb[0].mxu0
  %v224 = vadd.f32 0.0, %v223
  %v225 = vpop.f32.mrb[0].mxu0
  %226 = vmatprep.mubr.f32.mxu0 0.0
  %227 = vmatmul.mubr.f32.gmra.mrb[0].mxu0 %v93
  %v228 = vpop.f32.mrb[0].mxu0
  %v229 = vadd.f32 0.0, %v228
  %v230 = vpop.f32.mrb[0].mxu0
  %231 = vmatprep.mubr.f32.mxu0 0.0
  %232 = vmatmul.mubr.f32.gmra.mrb[0].mxu0 %v96
  %v233 = vpop.f32.mrb[0].mxu0
  %v234 = vadd.f32 0.0, %v233
  %v235 = vpop.f32.mrb[0].mxu0
  %236 = vmatprep.mubr.f32.mxu0 0.0
  %237 = vmatmul.mubr.f32.gmra.mrb[0].mxu0 %v99
  %v238 = vpop.f32.mrb[0].mxu0
  %v239 = vadd.f32 0.0, %v238
  %v240 = vpop.f32.mrb[0].mxu0
  %241 = vmatprep.mubr.f32.mxu0 0.0
  %242 = vmatmul.mubr.f32.gmra.mrb[0].mxu0 %v102
  %v243 = vpop.f32.mrb[0].mxu0
  %v244 = vadd.f32 0.0, %v243
  %v245 = vpop.f32.mrb[0].mxu0
  %246 = vmatprep.mubr.f32.mxu0 0.0
  %247 = vmatmul.mubr.f32.gmra.mrb[0].mxu0 %v105
  %v248 = vpop.f32.mrb[0].mxu0
  %v249 = vadd.f32 0.0, %v248
  %v250 = vpop.f32.mrb[0].mxu0
  %251 = vdwg.mxu0
  %v252 = vld [vmem:[#allocation2] sm:$0xff]
  %v253 = vld [vmem:[#allocation2 + $0x8] sm:$0xff]
  %v254 = vld [vmem:[#allocation2 + $0x10] sm:$0xff]
  %v255 = vld [vmem:[#allocation2 + $0x18] sm:$0xff]
  %v256 = vld [vmem:[#allocation2 + $0x20] sm:$0xff]
  %v257 = vld [vmem:[#allocation2 + $0x28] sm:$0xff]
  %v258 = vld [vmem:[#allocation2 + $0x30] sm:$0xff]
  %v259 = vld [vmem:[#allocation2 + $0x38] sm:$0xff]
  %v260 = vld [vmem:[#allocation2 + $0x40] sm:$0xff]
  %v261 = vld [vmem:[#allocation2 + $0x48] sm:$0xff]
  %v262 = vld [vmem:[#allocation2 + $0x50] sm:$0xff]
  %v263 = vld [vmem:[#allocation2 + $0x58] sm:$0xff]
  %v264 = vld [vmem:[#allocation2 + $0x60] sm:$0xff]
  %v265 = vld [vmem:[#allocation2 + $0x68] sm:$0xff]
  %v266 = vld [vmem:[#allocation2 + $0x70] sm:$0xff]
  %v267 = vld [vmem:[#allocation2 + $0x78] sm:$0xff]
  %v268 = vld [vmem:[%s1] sm:$0xff]
  %v269 = vld [vmem:[%s1 + $0x8] sm:$0xff]
  %v270 = vld [vmem:[%s1 + $0x10] sm:$0xff]
  %v271 = vld [vmem:[%s1 + $0x18] sm:$0xff]
  %v272 = vld [vmem:[%s1 + $0x20] sm:$0xff]
  %v273 = vld [vmem:[%s1 + $0x28] sm:$0xff]
  %v274 = vld [vmem:[%s1 + $0x30] sm:$0xff]
  %v275 = vld [vmem:[%s1 + $0x38] sm:$0xff]
  %v276 = vld [vmem:[%s1 + $0x40] sm:$0xff]
  %v277 = vld [vmem:[%s1 + $0x48] sm:$0xff]
  %v278 = vld [vmem:[%s1 + $0x50] sm:$0xff]
  %v279 = vld [vmem:[%s1 + $0x58] sm:$0xff]
  %v280 = vld [vmem:[%s1 + $0x60] sm:$0xff]
  %v281 = vld [vmem:[%s1 + $0x68] sm:$0xff]
  %v282 = vld [vmem:[%s1 + $0x70] sm:$0xff]
  %v283 = vld [vmem:[%s1 + $0x78] sm:$0xff]
  %284 = vmatprep.subr.mxu0 0.0
  %285 = vmatpush1.msra.mxu0 %v174
  %286 = vmatprep.subr.mxu0 0.0
  %287 = vmatpush1.msra.mxu0 %v179
  %288 = vmatprep.subr.mxu0 0.0
  %289 = vmatpush1.msra.mxu0 %v184
  %290 = vmatprep.subr.mxu0 0.0
  %291 = vmatpush1.msra.mxu0 %v189
  %292 = vmatprep.subr.mxu0 0.0
  %293 = vmatpush1.msra.mxu0 %v194
  %294 = vmatprep.subr.mxu0 0.0
  %295 = vmatpush1.msra.mxu0 %v199
  %296 = vmatprep.subr.mxu0 0.0
  %297 = vmatpush1.msra.mxu0 %v204
  %298 = vmatprep.subr.mxu0 0.0
  %299 = vmatpush1.msra.mxu0 %v209
  %300 = vmatprep.subr.mxu0 0.0
  %301 = vmatpush1.msra.mxu0 %v214
  %302 = vmatprep.subr.mxu0 0.0
  %303 = vmatpush1.msra.mxu0 %v219
  %304 = vmatprep.subr.mxu0 0.0
  %305 = vmatpush1.msra.mxu0 %v224
  %306 = vmatprep.subr.mxu0 0.0
  %307 = vmatpush1.msra.mxu0 %v229
  %308 = vmatprep.subr.mxu0 0.0
  %309 = vmatpush1.msra.mxu0 %v234
  %310 = vmatprep.subr.mxu0 0.0
  %311 = vmatpush1.msra.mxu0 %v239
  %312 = vmatprep.subr.mxu0 0.0
  %313 = vmatpush1.msra.mxu0 %v244
  %314 = vmatprep.subr.mxu0 0.0
  %315 = vmatpush1.msra.mxu0 %v249
  %316 = vmatprep.subr.mxu0 0.0
  %317 = vmatpush1.msra.mxu0 0.0
  %318 = vmatprep.subr.mxu0 0.0
  %319 = vmatpush1.msra.mxu0 0.0
  %320 = vmatprep.subr.mxu0 0.0
  %321 = vmatpush1.msra.mxu0 0.0
  %322 = vmatprep.subr.mxu0 0.0
  %323 = vmatpush1.msra.mxu0 0.0
  %324 = vmatprep.subr.mxu0 0.0
  %325 = vmatpush1.msra.mxu0 0.0
  %326 = vmatprep.subr.mxu0 0.0
  %327 = vmatpush1.msra.mxu0 0.0
  %328 = vmatprep.subr.mxu0 0.0
  %329 = vmatpush1.msra.mxu0 0.0
  %330 = vmatprep.subr.mxu0 0.0
  %331 = vmatpush1.msra.mxu0 0.0
  %332 = vmatprep.subr.mxu0 0.0
  %333 = vmatpush1.msra.mxu0 0.0
  %334 = vmatprep.subr.mxu0 0.0
  %335 = vmatpush1.msra.mxu0 0.0
  %336 = vmatprep.subr.mxu0 0.0
  %337 = vmatpush1.msra.mxu0 0.0
  %338 = vmatprep.subr.mxu0 0.0
  %339 = vmatpush1.msra.mxu0 0.0
  %340 = vmatprep.subr.mxu0 0.0
  %341 = vmatpush1.msra.mxu0 0.0
  %342 = vmatprep.subr.mxu0 0.0
  %343 = vmatpush1.msra.mxu0 0.0
  %344 = vmatprep.subr.mxu0 0.0
  %345 = vmatpush1.msra.mxu0 0.0
  %346 = vmatprep.subr.mxu0 0.0
  %347 = vmatpush1.msra.mxu0 0.0
  %348 = vmatprep.mubr.f32.mxu0 0.0
  %349 = vmatmul.mubr.f32.gmra.mrb[0].mxu0 %v268
  %v350 = vpop.f32.mrb[0].mxu0
  %v351 = vadd.f32 0.0, %v350
  %v352 = vpop.f32.mrb[0].mxu0
  %353 = vmatprep.mubr.f32.mxu0 0.0
  %354 = vmatmul.mubr.f32.gmra.mrb[0].mxu0 %v269
  %v355 = vpop.f32.mrb[0].mxu0
  %v356 = vadd.f32 0.0, %v355
  %v357 = vpop.f32.mrb[0].mxu0
  %358 = vmatprep.mubr.f32.mxu0 0.0
  %359 = vmatmul.mubr.f32.gmra.mrb[0].mxu0 %v270
  %v360 = vpop.f32.mrb[0].mxu0
  %v361 = vadd.f32 0.0, %v360
  %v362 = vpop.f32.mrb[0].mxu0
  %363 = vmatprep.mubr.f32.mxu0 0.0
  %364 = vmatmul.mubr.f32.gmra.mrb[0].mxu0 %v271
  %v365 = vpop.f32.mrb[0].mxu0
  %v366 = vadd.f32 0.0, %v365
  %v367 = vpop.f32.mrb[0].mxu0
  %368 = vmatprep.mubr.f32.mxu0 0.0
  %369 = vmatmul.mubr.f32.gmra.mrb[0].mxu0 %v272
  %v370 = vpop.f32.mrb[0].mxu0
  %v371 = vadd.f32 0.0, %v370
  %v372 = vpop.f32.mrb[0].mxu0
  %373 = vmatprep.mubr.f32.mxu0 0.0
  %374 = vmatmul.mubr.f32.gmra.mrb[0].mxu0 %v273
  %v375 = vpop.f32.mrb[0].mxu0
  %v376 = vadd.f32 0.0, %v375
  %v377 = vpop.f32.mrb[0].mxu0
  %378 = vmatprep.mubr.f32.mxu0 0.0
  %379 = vmatmul.mubr.f32.gmra.mrb[0].mxu0 %v274
  %v380 = vpop.f32.mrb[0].mxu0
  %v381 = vadd.f32 0.0, %v380
  %v382 = vpop.f32.mrb[0].mxu0
  %383 = vmatprep.mubr.f32.mxu0 0.0
  %384 = vmatmul.mubr.f32.gmra.mrb[0].mxu0 %v275
  %v385 = vpop.f32.mrb[0].mxu0
  %v386 = vadd.f32 0.0, %v385
  %v387 = vpop.f32.mrb[0].mxu0
  %388 = vmatprep.mubr.f32.mxu0 0.0
  %389 = vmatmul.mubr.f32.gmra.mrb[0].mxu0 %v276
  %v390 = vpop.f32.mrb[0].mxu0
  %v391 = vadd.f32 0.0, %v390
  %v392 = vpop.f32.mrb[0].mxu0
  %393 = vmatprep.mubr.f32.mxu0 0.0
  %394 = vmatmul.mubr.f32.gmra.mrb[0].mxu0 %v277
  %v395 = vpop.f32.mrb[0].mxu0
  %v396 = vadd.f32 0.0, %v395
  %v397 = vpop.f32.mrb[0].mxu0
  %398 = vmatprep.mubr.f32.mxu0 0.0
  %399 = vmatmul.mubr.f32.gmra.mrb[0].mxu0 %v278
  %v400 = vpop.f32.mrb[0].mxu0
  %v401 = vadd.f32 0.0, %v400
  %v402 = vpop.f32.mrb[0].mxu0
  %403 = vmatprep.mubr.f32.mxu0 0.0
  %404 = vmatmul.mubr.f32.gmra.mrb[0].mxu0 %v279
  %v405 = vpop.f32.mrb[0].mxu0
  %v406 = vadd.f32 0.0, %v405
  %v407 = vpop.f32.mrb[0].mxu0
  %408 = vmatprep.mubr.f32.mxu0 0.0
  %409 = vmatmul.mubr.f32.gmra.mrb[0].mxu0 %v280
  %v410 = vpop.f32.mrb[0].mxu0
  %v411 = vadd.f32 0.0, %v410
  %v412 = vpop.f32.mrb[0].mxu0
  %413 = vmatprep.mubr.f32.mxu0 0.0
  %414 = vmatmul.mubr.f32.gmra.mrb[0].mxu0 %v281
  %v415 = vpop.f32.mrb[0].mxu0
  %v416 = vadd.f32 0.0, %v415
  %v417 = vpop.f32.mrb[0].mxu0
  %418 = vmatprep.mubr.f32.mxu0 0.0
  %419 = vmatmul.mubr.f32.gmra.mrb[0].mxu0 %v282
  %v420 = vpop.f32.mrb[0].mxu0
  %v421 = vadd.f32 0.0, %v420
  %v422 = vpop.f32.mrb[0].mxu0
  %423 = vmatprep.mubr.f32.mxu0 0.0
  %424 = vmatmul.mubr.f32.gmra.mrb[0].mxu0 %v283
  %v425 = vpop.f32.mrb[0].mxu0
  %v426 = vadd.f32 0.0, %v425
  %v427 = vpop.f32.mrb[0].mxu0
  %428 = vdwg.mxu0
  %v429 = vadd.f32 %v252, %v351
  %v430 = vadd.f32 %v253, %v356
  %v431 = vadd.f32 %v254, %v361
  %v432 = vadd.f32 %v255, %v366
  %v433 = vadd.f32 %v256, %v371
  %v434 = vadd.f32 %v257, %v376
  %v435 = vadd.f32 %v258, %v381
  %v436 = vadd.f32 %v259, %v386
  %v437 = vadd.f32 %v260, %v391
  %v438 = vadd.f32 %v261, %v396
  %v439 = vadd.f32 %v262, %v401
  %v440 = vadd.f32 %v263, %v406
  %v441 = vadd.f32 %v264, %v411
  %v442 = vadd.f32 %v265, %v416
  %v443 = vadd.f32 %v266, %v421
  %v444 = vadd.f32 %v267, %v426
  %vm445 = vcmask 130048
  %446 = vst.msk [vmem:[#allocation2] sm:$0xff] %vm445, %v429
  %447 = vst.msk [vmem:[#allocation2 + $0x8] sm:$0xff] %vm445, %v430
  %448 = vst.msk [vmem:[#allocation2 + $0x10] sm:$0xff] %vm445, %v431
  %449 = vst.msk [vmem:[#allocation2 + $0x18] sm:$0xff] %vm445, %v432
  %450 = vst.msk [vmem:[#allocation2 + $0x20] sm:$0xff] %vm445, %v433
  %451 = vst.msk [vmem:[#allocation2 + $0x28] sm:$0xff] %vm445, %v434
  %452 = vst.msk [vmem:[#allocation2 + $0x30] sm:$0xff] %vm445, %v435
  %453 = vst.msk [vmem:[#allocation2 + $0x38] sm:$0xff] %vm445, %v436
  %454 = vst.msk [vmem:[#allocation2 + $0x40] sm:$0xff] %vm445, %v437
  %455 = vst.msk [vmem:[#allocation2 + $0x48] sm:$0xff] %vm445, %v438
  %456 = vst.msk [vmem:[#allocation2 + $0x50] sm:$0xff] %vm445, %v439
  %457 = vst.msk [vmem:[#allocation2 + $0x58] sm:$0xff] %vm445, %v440
  %458 = vst.msk [vmem:[#allocation2 + $0x60] sm:$0xff] %vm445, %v441
  %459 = vst.msk [vmem:[#allocation2 + $0x68] sm:$0xff] %vm445, %v442
  %460 = vst.msk [vmem:[#allocation2 + $0x70] sm:$0xff] %vm445, %v443
  %461 = vst.msk [vmem:[#allocation2 + $0x78] sm:$0xff] %vm445, %v444
  // Predicated region
  $region22: #{tpu_custom_call.1} parent=0 // pred_check
    %p462 = pneg %p17
  $region23: #{tpu_custom_call.1} parent=0 // pred_check_branch
    %464 = sbr.rel (%p462) target = $region25
  $region24: #{tpu_custom_call.1} parent=0 // pred_region
    %v465 = vld [vmem:[#allocation2] sm:$0xff]
    %v466 = vld [vmem:[#allocation2 + $0x8] sm:$0xff]
    %v467 = vld [vmem:[#allocation2 + $0x10] sm:$0xff]
    %v468 = vld [vmem:[#allocation2 + $0x18] sm:$0xff]
    %v469 = vld [vmem:[#allocation2 + $0x20] sm:$0xff]
    %v470 = vld [vmem:[#allocation2 + $0x28] sm:$0xff]
    %v471 = vld [vmem:[#allocation2 + $0x30] sm:$0xff]
    %v472 = vld [vmem:[#allocation2 + $0x38] sm:$0xff]
    %v473 = vld [vmem:[#allocation2 + $0x40] sm:$0xff]
    %v474 = vld [vmem:[#allocation2 + $0x48] sm:$0xff]
    %v475 = vld [vmem:[#allocation2 + $0x50] sm:$0xff]
    %v476 = vld [vmem:[#allocation2 + $0x58] sm:$0xff]
    %v477 = vld [vmem:[#allocation2 + $0x60] sm:$0xff]
    %v478 = vld [vmem:[#allocation2 + $0x68] sm:$0xff]
    %v479 = vld [vmem:[#allocation2 + $0x70] sm:$0xff]
    %v480 = vld [vmem:[#allocation2 + $0x78] sm:$0xff]
    %v481 = vld [vmem:[%s3] sm:$0x1]
    %v483 = vlaneseq
    %v484 = vshrl.u32 %v483, 7
    %v485 = vsub.s32 0, %v484
    %v486 = vrot.slane %v481, %v485
    %v488 = vadd.f32 %v465, %v486
    %v489 = vadd.f32 %v466, %v486
    %v490 = vadd.f32 %v467, %v486
    %v491 = vadd.f32 %v468, %v486
    %v492 = vadd.f32 %v469, %v486
    %v493 = vadd.f32 %v470, %v486
    %v494 = vadd.f32 %v471, %v486
    %v495 = vadd.f32 %v472, %v486
    %v496 = vadd.f32 %v473, %v486
    %v497 = vadd.f32 %v474, %v486
    %v498 = vadd.f32 %v475, %v486
    %v499 = vadd.f32 %v476, %v486
    %v500 = vadd.f32 %v477, %v486
    %v501 = vadd.f32 %v478, %v486
    %v502 = vadd.f32 %v479, %v486
    %v503 = vadd.f32 %v480, %v486
    %504 = vst.msk [vmem:[%s4] sm:$0xff] %vm445, %v488
    %505 = vst.msk [vmem:[%s4 + $0x8] sm:$0xff] %vm445, %v489
    %506 = vst.msk [vmem:[%s4 + $0x10] sm:$0xff] %vm445, %v490
    %507 = vst.msk [vmem:[%s4 + $0x18] sm:$0xff] %vm445, %v491
    %508 = vst.msk [vmem:[%s4 + $0x20] sm:$0xff] %vm445, %v492
    %509 = vst.msk [vmem:[%s4 + $0x28] sm:$0xff] %vm445, %v493
    %510 = vst.msk [vmem:[%s4 + $0x30] sm:$0xff] %vm445, %v494
    %511 = vst.msk [vmem:[%s4 + $0x38] sm:$0xff] %vm445, %v495
    %512 = vst.msk [vmem:[%s4 + $0x40] sm:$0xff] %vm445, %v496
    %513 = vst.msk [vmem:[%s4 + $0x48] sm:$0xff] %vm445, %v497
    %514 = vst.msk [vmem:[%s4 + $0x50] sm:$0xff] %vm445, %v498
    %515 = vst.msk [vmem:[%s4 + $0x58] sm:$0xff] %vm445, %v499
    %516 = vst.msk [vmem:[%s4 + $0x60] sm:$0xff] %vm445, %v500
    %517 = vst.msk [vmem:[%s4 + $0x68] sm:$0xff] %vm445, %v501
    %518 = vst.msk [vmem:[%s4 + $0x70] sm:$0xff] %vm445, %v502
    %519 = vst.msk [vmem:[%s4 + $0x78] sm:$0xff] %vm445, %v503
  $region25: #{tpu_custom_call.1} parent=0 // pred_fallthru
    _
  // Predicated region
  $region26: #{tpu_custom_call.1} parent=0 // pred_check
    _
  $region27: #{tpu_custom_call.1} parent=0 // pred_check_branch
    %521 = sbr.rel (0) target = $region29
  $region28: #{tpu_custom_call.1} parent=0 // pred_region
    _
  $region29: #{tpu_custom_call.1} parent=0 // pred_fallthru
    _
  // Predicated region
  $region30: #{tpu_custom_call.1} parent=0 // pred_check
    _
  $region31: #{tpu_custom_call.1} parent=0 // pred_check_branch
    %523 = sbr.rel (0) target = $region33
  $region32: #{tpu_custom_call.1} parent=0 // pred_region
    _
  $region33: #{tpu_custom_call.1} parent=0 // pred_fallthru
    _

</llo_original>
